<compile_context>
chip_gen: v5e
topology: v5e:2x2
jax: 0.10.0
libtpu: 0.0.40
codegen_flags: <defaults>
</compile_context>

<pallas_src>
import jax
import jax.numpy as jnp
from jax.experimental import pallas as pl
from jax.experimental.pallas import tpu as pltpu

_LANES = 128


def _ceil_div(a, b):
    return -(-a // b)


def _make_dice_kernel(C, S_valid, tsl, masked):
    """Kernel over grid (B, n_s); each step handles a (C, tsl, 128) logit slab."""
    Ce = C - 1
    nfull = tsl // 8                 # full 8-sublane-row chunks per step
    rem = tsl - nfull * 8            # ragged chunk height (only for tiny images)

    def kernel(x_ref, t_ref, out_ref, acc_ref):
        s = pl.program_id(1)

        @pl.when(s == 0)
        def _init():
            acc_ref[...] = jnp.zeros_like(acc_ref)

        block_base = s * (tsl * _LANES)          # first global pixel of this block

        def chunk(row0, h, lidx):
            """Per-class (num, den1, den2) contributions of an (h, 128) chunk."""
            xs = [x_ref[0, c, pl.ds(row0, h), :].astype(jnp.float32)
                  for c in range(C)]
            lab = t_ref[0, 0, pl.ds(row0, h), :]
            if masked:
                # Pixels at or past S_valid are padding / ragged-block garbage.
                valid = lidx < (S_valid - (block_base + row0 * _LANES))
                xs = [jnp.where(valid, xc, 0.0) for xc in xs]   # kill NaN/Inf garbage
                lab = jnp.where(valid, lab, 0)
            m = xs[0]
            for c in range(1, C):
                m = jnp.maximum(m, xs[c])
            es = [jnp.exp(xc - m) for xc in xs]
            se = es[0]
            for c in range(1, C):
                se = se + es[c]
            inv = pl.reciprocal(se, approx=True)     # EUP slot, frees VPU work
            if masked:
                inv = jnp.where(valid, inv, 0.0)     # one select zeroes every p
            out = []
            for c in range(1, C):                    # class 0 is dropped by the loss
                p = es[c] * inv
                hit = lab == c
                out.append(jnp.where(hit, p, 0.0))   # num
                out.append(p * p)                    # den1
                out.append(jnp.where(hit, 1.0, 0.0))  # den2
            return out

        if nfull > 0:
            if masked:
                lidx8 = (jax.lax.broadcasted_iota(jnp.int32, (8, _LANES), 0) * _LANES
                         + jax.lax.broadcasted_iota(jnp.int32, (8, _LANES), 1))
            else:
                lidx8 = None

            def body(j, carry):
                row0 = pl.multiple_of(j * 8, 8)
                contrib = chunk(row0, 8, lidx8)
                return tuple(a + b for a, b in zip(carry, contrib))

            init = tuple(jnp.zeros((8, _LANES), jnp.float32) for _ in range(3 * Ce))
            sums = jax.lax.fori_loop(0, nfull, body, init, unroll=2)
            for i in range(3 * Ce):                  # single flush per grid step
                acc_ref[i] += sums[i]

        if rem > 0:                                  # only for tiny single-block images
            if masked:
                lidxr = (jax.lax.broadcasted_iota(jnp.int32, (rem, _LANES), 0) * _LANES
                         + jax.lax.broadcasted_iota(jnp.int32, (rem, _LANES), 1))
            else:
                lidxr = None
            contrib = chunk(nfull * 8, rem, lidxr)
            for i in range(3 * Ce):
                acc_ref[i, 0:rem, :] += contrib[i]

        @pl.when(s == pl.num_programs(1) - 1)
        def _finalize():
            eps = jnp.float32(1e-6)
            lane = jax.lax.broadcasted_iota(jnp.int32, (1, _LANES), 1)
            row = jnp.zeros((1, _LANES), jnp.float32)
            for c in range(Ce):
                n = jnp.sum(acc_ref[3 * c + 0], axis=0, keepdims=True
                            ).sum(axis=1, keepdims=True)
                d1 = jnp.sum(acc_ref[3 * c + 1], axis=0, keepdims=True
                             ).sum(axis=1, keepdims=True)
                d2 = jnp.sum(acc_ref[3 * c + 2], axis=0, keepdims=True
                             ).sum(axis=1, keepdims=True)
                dice_c = (2.0 * n + eps) / (d1 + d2 + eps + jnp.float32(1e-10))
                row = jnp.where(lane == c, dice_c, row)
            out_ref[0] = row                         # lane-dense (1, 128) store

    return kernel


def _plan_tiles(R, C, x_itemsize, spatial_tile):
    """Choose (tsl, n_s): row-block height and number of spatial grid steps."""
    # Double-buffered per-step input footprint: 2 * tsl * 128 * (C*itemsize + 4) B.
    bytes_per_row = (C * x_itemsize + 4) * _LANES
    vmem_budget = 12 * 1024 * 1024       # fits v5e 16 MiB scoped / v7x 32 MiB default
    tsl_cap = max(32, (vmem_budget // (2 * bytes_per_row)) // 32 * 32)
    tsl_target = max(32, (min(spatial_tile // _LANES, tsl_cap) // 32) * 32)
    if R <= tsl_target:
        return R, 1                      # single full-dim block is always legal
    n_s = _ceil_div(R, tsl_target)
    # Balance block sizes (less masked waste in the ragged last block); multiple
    # of 32 keeps f32 / bf16 / int8 sublane tiling legal.
    tsl = min(tsl_target, _ceil_div(_ceil_div(R, n_s), 32) * 32)
    n_s = _ceil_div(R, tsl)
    return tsl, n_s


def _dice_matrix(x, t, S_valid, tsl, n_s, masked):
    """x: (B, C, R, 128) logits (native dtype); t: (B, 1, R, 128) int32 labels.
    Returns (B, C-1) dice for classes 1..C-1."""
    B, C, _, _ = x.shape
    Ce = C - 1
    kernel = _make_dice_kernel(C, S_valid, tsl, masked)

    out = pl.pallas_call(
        kernel,
        out_shape=jax.ShapeDtypeStruct((B, 1, _LANES), jnp.float32),
        grid_spec=pltpu.PrefetchScalarGridSpec(
            num_scalar_prefetch=0,
            grid=(B, n_s),
            in_specs=[
                pl.BlockSpec((1, C, tsl, _LANES), lambda b, s: (b, 0, s, 0)),
                pl.BlockSpec((1, 1, tsl, _LANES), lambda b, s: (b, 0, s, 0)),
            ],
            out_specs=pl.BlockSpec((1, 1, _LANES), lambda b, s: (b, 0, 0)),
            scratch_shapes=[
                # num/den1/den2 partial sums per class, independent of tile size.
                pltpu.VMEM((3 * Ce, 8, _LANES), jnp.float32),
            ],
        ),
        compiler_params=pltpu.CompilerParams(
            dimension_semantics=("parallel", "arbitrary")),
    )(x, t)
    return out[:, 0, :Ce]


def dice_loss(logits, target, *, spatial_tile=131072):
    """Matches DiceLoss.forward: logits NCHW (B,C,H,W), target labels (B,H,W)."""
    B, C, H, W = logits.shape
    S = H * W

    x = logits.reshape(B, C, S)                    # native dtype (f32 or bf16)
    t = target.reshape(B, 1, S).astype(jnp.int32)  # defensive cast (int64 targets)

    R = _ceil_div(S, _LANES)
    if R * _LANES != S:
        # Rare case (H*W not a multiple of 128): a minimal 128-granularity pad is
        # needed for the free (R, 128) reshape; padded pixels are masked in-kernel.
        # TODO(synk): manual-DMA tail from a pl.ANY ref to avoid this copy too.
        pad = R * _LANES - S
        x = jnp.pad(x, ((0, 0), (0, 0), (0, pad)))
        t = jnp.pad(t, ((0, 0), (0, 0), (0, pad)))
    x = x.reshape(B, C, R, _LANES)                 # free reshape (contiguous view)
    t = t.reshape(B, 1, R, _LANES)

    tsl, n_s = _plan_tiles(R, C, jnp.dtype(x.dtype).itemsize, spatial_tile)
    masked = (n_s * tsl * _LANES != S)             # ragged last block and/or 128-pad

    # TODO(synk): for B == 1 on v7x, split the spatial axis into a leading
    # "parallel" axis of 2 (partial-sum outputs) to occupy both TensorCores.
    dice = _dice_matrix(x, t, S, tsl, n_s, masked)   # (B, C-1): classes 1..C-1
    d = jnp.sum(dice, axis=1) / (C - 1)
    dice_total = -1.0 * jnp.sum(d) / B
    return 1.0 + dice_total


def _dice_loss_ref(logits, target):
    """Pure-JAX reference mirroring the PyTorch code."""
    B, C, H, W = logits.shape
    pred = jax.nn.softmax(logits.astype(jnp.float32), axis=1)
    cols = []
    for i in range(1, C):
        pi = pred[:, i, :, :].reshape(B, -1)
        ti = (target == i).astype(jnp.float32).reshape(B, -1)
        num = jnp.sum(pi * ti, axis=1)
        den1 = jnp.sum(pi * pi, axis=1)
        den2 = jnp.sum(ti * ti, axis=1)
        eps = 1e-6
        cols.append((2 * num + eps) / (den1 + den2 + eps + 1e-10))
    dice = jnp.stack(cols, axis=1)
    d = jnp.sum(dice, axis=1) / (C - 1)
    return 1.0 + (-1.0 * jnp.sum(d) / B)


if __name__ == "__main__":
    key = jax.random.PRNGKey(0)

    # 1) Module-sized inputs: single spatial block, no masking.
    k1, k2 = jax.random.split(key)
    B, C, H, W = 2, 4, 16, 16
    logits = jax.random.normal(k1, (B, C, H, W), dtype=jnp.float32)
    target = jax.random.randint(k2, (B, H, W), 0, C, dtype=jnp.int32)
    loss = jax.block_until_ready(dice_loss(logits, target))
    ref = jax.block_until_ready(_dice_loss_ref(logits, target))
    # Tolerance loosened to 2e-3: softmax normalisation uses the EUP approximate
    # reciprocal (hot-path perf); math is otherwise identical f32.
    assert jnp.allclose(loss, ref, rtol=1e-3, atol=2e-3), (loss, ref)

    # 2) Multi-block spatial tiling with a ragged (masked) last block, no pad.
    k3, k4 = jax.random.split(k1)
    B2, C2, H2, W2 = 2, 4, 80, 80          # S=6400 -> R=50 rows -> 2 blocks of 32
    logits2 = jax.random.normal(k3, (B2, C2, H2, W2), dtype=jnp.float32)
    target2 = jax.random.randint(k4, (B2, H2, W2), 0, C2, dtype=jnp.int32)
    loss2 = jax.block_until_ready(dice_loss(logits2, target2, spatial_tile=4096))
    ref2 = jax.block_until_ready(_dice_loss_ref(logits2, target2))
    assert jnp.allclose(loss2, ref2, rtol=1e-3, atol=2e-3), (loss2, ref2)

    # 3) H*W not a multiple of 128 (minimal pad + in-kernel masking).
    k5, k6 = jax.random.split(k3)
    B3, C3, H3, W3 = 2, 4, 10, 10          # S=100 -> padded to 128
    logits3 = jax.random.normal(k5, (B3, C3, H3, W3), dtype=jnp.float32)
    target3 = jax.random.randint(k6, (B3, H3, W3), 0, C3, dtype=jnp.int32)
    loss3 = jax.block_until_ready(dice_loss(logits3, target3))
    ref3 = jax.block_until_ready(_dice_loss_ref(logits3, target3))
    assert jnp.allclose(loss3, ref3, rtol=1e-3, atol=2e-3), (loss3, ref3)

    print("KERNEL_OK")
</pallas_src>

<mosaic_0001>
module attributes {stable_mosaic.version = 11 : i64} {
  func.func @kernel(%arg0: i32, %arg1: i32, %arg2: memref<1x4x2x128xf32, #tpu.memory_space<vmem>>, %arg3: memref<1x1x2x128xi32, #tpu.memory_space<vmem>>, %arg4: memref<1x1x128xf32, #tpu.memory_space<vmem>>, %arg5: memref<9x8x128xf32, #tpu.memory_space<vmem>>) attributes {dimension_semantics = [#tpu.dimension_semantics<parallel>, #tpu.dimension_semantics<arbitrary>], iteration_bounds = array<i64: 2, 1>, scalar_prefetch = 0 : i64, scratch_operands = 1 : i64, tpu.core_type = #tpu.core_type<tc>, window_params = [{transform_indices = @transform_0, window_bounds = array<i64: 1, 4, 2, 128>}, {transform_indices = @transform_1, window_bounds = array<i64: 1, 1, 2, 128>}, {transform_indices = @transform_2, window_bounds = array<i64: 1, 1, 128>}]} {
    %c0_i32 = arith.constant 0 : i32
    %0 = arith.cmpi eq, %arg1, %c0_i32 : i32
    %1 = arith.extui %0 : i1 to i32
    %c0_i32_0 = arith.constant 0 : i32
    %2 = arith.cmpi ne, %1, %c0_i32_0 : i32
    scf.if %2 {
      %cst_76 = arith.constant 0.000000e+00 : f32
      %112 = vector.broadcast %cst_76 : f32 to vector<9x8x128xf32>
      %c0_77 = arith.constant 0 : index
      %c0_78 = arith.constant 0 : index
      %c0_79 = arith.constant 0 : index
      %113 = vector.load %arg5[%c0_77, %c0_78, %c0_79] : memref<9x8x128xf32, #tpu.memory_space<vmem>>, vector<9x8x128xf32>
      tpu.vector_store %arg5[%c0_77, %c0_78, %c0_79], %112 {strides = array<i32>} : memref<9x8x128xf32, #tpu.memory_space<vmem>>, vector<9x8x128xf32>,
    } else {
    }
    %c0 = arith.constant 0 : index
    %c0_1 = arith.constant 0 : index
    %c0_2 = arith.constant 0 : index
    %c0_3 = arith.constant 0 : index
    %3 = vector.load %arg2[%c0, %c0_1, %c0_2, %c0_3] : memref<1x4x2x128xf32, #tpu.memory_space<vmem>>, vector<1x1x2x128xf32>
    %4 = vector.shape_cast %3 : vector<1x1x2x128xf32> to vector<2x128xf32>
    %c0_4 = arith.constant 0 : index
    %c1 = arith.constant 1 : index
    %c0_5 = arith.constant 0 : index
    %c0_6 = arith.constant 0 : index
    %5 = vector.load %arg2[%c0_4, %c1, %c0_5, %c0_6] : memref<1x4x2x128xf32, #tpu.memory_space<vmem>>, vector<1x1x2x128xf32>
    %6 = vector.shape_cast %5 : vector<1x1x2x128xf32> to vector<2x128xf32>
    %c0_7 = arith.constant 0 : index
    %c2 = arith.constant 2 : index
    %c0_8 = arith.constant 0 : index
    %c0_9 = arith.constant 0 : index
    %7 = vector.load %arg2[%c0_7, %c2, %c0_8, %c0_9] : memref<1x4x2x128xf32, #tpu.memory_space<vmem>>, vector<1x1x2x128xf32>
    %8 = vector.shape_cast %7 : vector<1x1x2x128xf32> to vector<2x128xf32>
    %c0_10 = arith.constant 0 : index
    %c3 = arith.constant 3 : index
    %c0_11 = arith.constant 0 : index
    %c0_12 = arith.constant 0 : index
    %9 = vector.load %arg2[%c0_10, %c3, %c0_11, %c0_12] : memref<1x4x2x128xf32, #tpu.memory_space<vmem>>, vector<1x1x2x128xf32>
    %10 = vector.shape_cast %9 : vector<1x1x2x128xf32> to vector<2x128xf32>
    %c0_13 = arith.constant 0 : index
    %c0_14 = arith.constant 0 : index
    %c0_15 = arith.constant 0 : index
    %c0_16 = arith.constant 0 : index
    %11 = vector.load %arg3[%c0_13, %c0_14, %c0_15, %c0_16] : memref<1x1x2x128xi32, #tpu.memory_space<vmem>>, vector<1x1x2x128xi32>
    %12 = vector.shape_cast %11 : vector<1x1x2x128xi32> to vector<2x128xi32>
    %13 = arith.maximumf %4, %6 : vector<2x128xf32>
    %14 = arith.maximumf %13, %8 : vector<2x128xf32>
    %15 = arith.maximumf %14, %10 : vector<2x128xf32>
    %16 = arith.subf %4, %15 : vector<2x128xf32>
    %17 = math.exp %16 : vector<2x128xf32>
    %18 = arith.subf %6, %15 : vector<2x128xf32>
    %19 = math.exp %18 : vector<2x128xf32>
    %20 = arith.subf %8, %15 : vector<2x128xf32>
    %21 = math.exp %20 : vector<2x128xf32>
    %22 = arith.subf %10, %15 : vector<2x128xf32>
    %23 = math.exp %22 : vector<2x128xf32>
    %24 = arith.addf %17, %19 : vector<2x128xf32>
    %25 = arith.addf %24, %21 : vector<2x128xf32>
    %26 = arith.addf %25, %23 : vector<2x128xf32>
    %27 = tpu.reciprocal %26 {approx = true} : vector<2x128xf32> -> vector<2x128xf32>
    %28 = arith.mulf %19, %27 : vector<2x128xf32>
    %c1_i32 = arith.constant 1 : i32
    %29 = vector.broadcast %c1_i32 : i32 to vector<2x128xi32>
    %30 = arith.cmpi eq, %12, %29 : vector<2x128xi32>
    %cst = arith.constant 0.000000e+00 : f32
    %31 = vector.broadcast %cst : f32 to vector<2x128xf32>
    %32 = arith.select %30, %28, %31 : vector<2x128xi1>, vector<2x128xf32>
    %33 = arith.mulf %28, %28 : vector<2x128xf32>
    %cst_17 = arith.constant 1.000000e+00 : f32
    %cst_18 = arith.constant 0.000000e+00 : f32
    %34 = vector.broadcast %cst_17 : f32 to vector<2x128xf32>
    %35 = vector.broadcast %cst_18 : f32 to vector<2x128xf32>
    %36 = arith.select %30, %34, %35 : vector<2x128xi1>, vector<2x128xf32>
    %37 = arith.mulf %21, %27 : vector<2x128xf32>
    %c2_i32 = arith.constant 2 : i32
    %38 = vector.broadcast %c2_i32 : i32 to vector<2x128xi32>
    %39 = arith.cmpi eq, %12, %38 : vector<2x128xi32>
    %cst_19 = arith.constant 0.000000e+00 : f32
    %40 = vector.broadcast %cst_19 : f32 to vector<2x128xf32>
    %41 = arith.select %39, %37, %40 : vector<2x128xi1>, vector<2x128xf32>
    %42 = arith.mulf %37, %37 : vector<2x128xf32>
    %cst_20 = arith.constant 1.000000e+00 : f32
    %cst_21 = arith.constant 0.000000e+00 : f32
    %43 = vector.broadcast %cst_20 : f32 to vector<2x128xf32>
    %44 = vector.broadcast %cst_21 : f32 to vector<2x128xf32>
    %45 = arith.select %39, %43, %44 : vector<2x128xi1>, vector<2x128xf32>
    %46 = arith.mulf %23, %27 : vector<2x128xf32>
    %c3_i32 = arith.constant 3 : i32
    %47 = vector.broadcast %c3_i32 : i32 to vector<2x128xi32>
    %48 = arith.cmpi eq, %12, %47 : vector<2x128xi32>
    %cst_22 = arith.constant 0.000000e+00 : f32
    %49 = vector.broadcast %cst_22 : f32 to vector<2x128xf32>
    %50 = arith.select %48, %46, %49 : vector<2x128xi1>, vector<2x128xf32>
    %51 = arith.mulf %46, %46 : vector<2x128xf32>
    %cst_23 = arith.constant 1.000000e+00 : f32
    %cst_24 = arith.constant 0.000000e+00 : f32
    %52 = vector.broadcast %cst_23 : f32 to vector<2x128xf32>
    %53 = vector.broadcast %cst_24 : f32 to vector<2x128xf32>
    %54 = arith.select %48, %52, %53 : vector<2x128xi1>, vector<2x128xf32>
    %c0_25 = arith.constant 0 : index
    %c0_26 = arith.constant 0 : index
    %c0_27 = arith.constant 0 : index
    %55 = vector.load %arg5[%c0_25, %c0_26, %c0_27] : memref<9x8x128xf32, #tpu.memory_space<vmem>>, vector<1x2x128xf32>
    %56 = vector.shape_cast %55 : vector<1x2x128xf32> to vector<2x128xf32>
    %57 = arith.addf %56, %32 : vector<2x128xf32>
    %c0_28 = arith.constant 0 : index
    %c0_29 = arith.constant 0 : index
    %c0_30 = arith.constant 0 : index
    %58 = vector.load %arg5[%c0_28, %c0_29, %c0_30] : memref<9x8x128xf32, #tpu.memory_space<vmem>>, vector<1x2x128xf32>
    %59 = vector.shape_cast %58 : vector<1x2x128xf32> to vector<2x128xf32>
    %60 = vector.shape_cast %57 : vector<2x128xf32> to vector<1x2x128xf32>
    tpu.vector_store %arg5[%c0_28, %c0_29, %c0_30], %60 {strides = array<i32>} : memref<9x8x128xf32, #tpu.memory_space<vmem>>, vector<1x2x128xf32>,
    %c1_31 = arith.constant 1 : index
    %c0_32 = arith.constant 0 : index
    %c0_33 = arith.constant 0 : index
    %61 = vector.load %arg5[%c1_31, %c0_32, %c0_33] : memref<9x8x128xf32, #tpu.memory_space<vmem>>, vector<1x2x128xf32>
    %62 = vector.shape_cast %61 : vector<1x2x128xf32> to vector<2x128xf32>
    %63 = arith.addf %62, %33 : vector<2x128xf32>
    %c1_34 = arith.constant 1 : index
    %c0_35 = arith.constant 0 : index
    %c0_36 = arith.constant 0 : index
    %64 = vector.load %arg5[%c1_34, %c0_35, %c0_36] : memref<9x8x128xf32, #tpu.memory_space<vmem>>, vector<1x2x128xf32>
    %65 = vector.shape_cast %64 : vector<1x2x128xf32> to vector<2x128xf32>
    %66 = vector.shape_cast %63 : vector<2x128xf32> to vector<1x2x128xf32>
    tpu.vector_store %arg5[%c1_34, %c0_35, %c0_36], %66 {strides = array<i32>} : memref<9x8x128xf32, #tpu.memory_space<vmem>>, vector<1x2x128xf32>,
    %c2_37 = arith.constant 2 : index
    %c0_38 = arith.constant 0 : index
    %c0_39 = arith.constant 0 : index
    %67 = vector.load %arg5[%c2_37, %c0_38, %c0_39] : memref<9x8x128xf32, #tpu.memory_space<vmem>>, vector<1x2x128xf32>
    %68 = vector.shape_cast %67 : vector<1x2x128xf32> to vector<2x128xf32>
    %69 = arith.addf %68, %36 : vector<2x128xf32>
    %c2_40 = arith.constant 2 : index
    %c0_41 = arith.constant 0 : index
    %c0_42 = arith.constant 0 : index
    %70 = vector.load %arg5[%c2_40, %c0_41, %c0_42] : memref<9x8x128xf32, #tpu.memory_space<vmem>>, vector<1x2x128xf32>
    %71 = vector.shape_cast %70 : vector<1x2x128xf32> to vector<2x128xf32>
    %72 = vector.shape_cast %69 : vector<2x128xf32> to vector<1x2x128xf32>
    tpu.vector_store %arg5[%c2_40, %c0_41, %c0_42], %72 {strides = array<i32>} : memref<9x8x128xf32, #tpu.memory_space<vmem>>, vector<1x2x128xf32>,
    %c3_43 = arith.constant 3 : index
    %c0_44 = arith.constant 0 : index
    %c0_45 = arith.constant 0 : index
    %73 = vector.load %arg5[%c3_43, %c0_44, %c0_45] : memref<9x8x128xf32, #tpu.memory_space<vmem>>, vector<1x2x128xf32>
    %74 = vector.shape_cast %73 : vector<1x2x128xf32> to vector<2x128xf32>
    %75 = arith.addf %74, %41 : vector<2x128xf32>
    %c3_46 = arith.constant 3 : index
    %c0_47 = arith.constant 0 : index
    %c0_48 = arith.constant 0 : index
    %76 = vector.load %arg5[%c3_46, %c0_47, %c0_48] : memref<9x8x128xf32, #tpu.memory_space<vmem>>, vector<1x2x128xf32>
    %77 = vector.shape_cast %76 : vector<1x2x128xf32> to vector<2x128xf32>
    %78 = vector.shape_cast %75 : vector<2x128xf32> to vector<1x2x128xf32>
    tpu.vector_store %arg5[%c3_46, %c0_47, %c0_48], %78 {strides = array<i32>} : memref<9x8x128xf32, #tpu.memory_space<vmem>>, vector<1x2x128xf32>,
    %c4 = arith.constant 4 : index
    %c0_49 = arith.constant 0 : index
    %c0_50 = arith.constant 0 : index
    %79 = vector.load %arg5[%c4, %c0_49, %c0_50] : memref<9x8x128xf32, #tpu.memory_space<vmem>>, vector<1x2x128xf32>
    %80 = vector.shape_cast %79 : vector<1x2x128xf32> to vector<2x128xf32>
    %81 = arith.addf %80, %42 : vector<2x128xf32>
    %c4_51 = arith.constant 4 : index
    %c0_52 = arith.constant 0 : index
    %c0_53 = arith.constant 0 : index
    %82 = vector.load %arg5[%c4_51, %c0_52, %c0_53] : memref<9x8x128xf32, #tpu.memory_space<vmem>>, vector<1x2x128xf32>
    %83 = vector.shape_cast %82 : vector<1x2x128xf32> to vector<2x128xf32>
    %84 = vector.shape_cast %81 : vector<2x128xf32> to vector<1x2x128xf32>
    tpu.vector_store %arg5[%c4_51, %c0_52, %c0_53], %84 {strides = array<i32>} : memref<9x8x128xf32, #tpu.memory_space<vmem>>, vector<1x2x128xf32>,
    %c5 = arith.constant 5 : index
    %c0_54 = arith.constant 0 : index
    %c0_55 = arith.constant 0 : index
    %85 = vector.load %arg5[%c5, %c0_54, %c0_55] : memref<9x8x128xf32, #tpu.memory_space<vmem>>, vector<1x2x128xf32>
    %86 = vector.shape_cast %85 : vector<1x2x128xf32> to vector<2x128xf32>
    %87 = arith.addf %86, %45 : vector<2x128xf32>
    %c5_56 = arith.constant 5 : index
    %c0_57 = arith.constant 0 : index
    %c0_58 = arith.constant 0 : index
    %88 = vector.load %arg5[%c5_56, %c0_57, %c0_58] : memref<9x8x128xf32, #tpu.memory_space<vmem>>, vector<1x2x128xf32>
    %89 = vector.shape_cast %88 : vector<1x2x128xf32> to vector<2x128xf32>
    %90 = vector.shape_cast %87 : vector<2x128xf32> to vector<1x2x128xf32>
    tpu.vector_store %arg5[%c5_56, %c0_57, %c0_58], %90 {strides = array<i32>} : memref<9x8x128xf32, #tpu.memory_space<vmem>>, vector<1x2x128xf32>,
    %c6 = arith.constant 6 : index
    %c0_59 = arith.constant 0 : index
    %c0_60 = arith.constant 0 : index
    %91 = vector.load %arg5[%c6, %c0_59, %c0_60] : memref<9x8x128xf32, #tpu.memory_space<vmem>>, vector<1x2x128xf32>
    %92 = vector.shape_cast %91 : vector<1x2x128xf32> to vector<2x128xf32>
    %93 = arith.addf %92, %50 : vector<2x128xf32>
    %c6_61 = arith.constant 6 : index
    %c0_62 = arith.constant 0 : index
    %c0_63 = arith.constant 0 : index
    %94 = vector.load %arg5[%c6_61, %c0_62, %c0_63] : memref<9x8x128xf32, #tpu.memory_space<vmem>>, vector<1x2x128xf32>
    %95 = vector.shape_cast %94 : vector<1x2x128xf32> to vector<2x128xf32>
    %96 = vector.shape_cast %93 : vector<2x128xf32> to vector<1x2x128xf32>
    tpu.vector_store %arg5[%c6_61, %c0_62, %c0_63], %96 {strides = array<i32>} : memref<9x8x128xf32, #tpu.memory_space<vmem>>, vector<1x2x128xf32>,
    %c7 = arith.constant 7 : index
    %c0_64 = arith.constant 0 : index
    %c0_65 = arith.constant 0 : index
    %97 = vector.load %arg5[%c7, %c0_64, %c0_65] : memref<9x8x128xf32, #tpu.memory_space<vmem>>, vector<1x2x128xf32>
    %98 = vector.shape_cast %97 : vector<1x2x128xf32> to vector<2x128xf32>
    %99 = arith.addf %98, %51 : vector<2x128xf32>
    %c7_66 = arith.constant 7 : index
    %c0_67 = arith.constant 0 : index
    %c0_68 = arith.constant 0 : index
    %100 = vector.load %arg5[%c7_66, %c0_67, %c0_68] : memref<9x8x128xf32, #tpu.memory_space<vmem>>, vector<1x2x128xf32>
    %101 = vector.shape_cast %100 : vector<1x2x128xf32> to vector<2x128xf32>
    %102 = vector.shape_cast %99 : vector<2x128xf32> to vector<1x2x128xf32>
    tpu.vector_store %arg5[%c7_66, %c0_67, %c0_68], %102 {strides = array<i32>} : memref<9x8x128xf32, #tpu.memory_space<vmem>>, vector<1x2x128xf32>,
    %c8 = arith.constant 8 : index
    %c0_69 = arith.constant 0 : index
    %c0_70 = arith.constant 0 : index
    %103 = vector.load %arg5[%c8, %c0_69, %c0_70] : memref<9x8x128xf32, #tpu.memory_space<vmem>>, vector<1x2x128xf32>
    %104 = vector.shape_cast %103 : vector<1x2x128xf32> to vector<2x128xf32>
    %105 = arith.addf %104, %54 : vector<2x128xf32>
    %c8_71 = arith.constant 8 : index
    %c0_72 = arith.constant 0 : index
    %c0_73 = arith.constant 0 : index
    %106 = vector.load %arg5[%c8_71, %c0_72, %c0_73] : memref<9x8x128xf32, #tpu.memory_space<vmem>>, vector<1x2x128xf32>
    %107 = vector.shape_cast %106 : vector<1x2x128xf32> to vector<2x128xf32>
    %108 = vector.shape_cast %105 : vector<2x128xf32> to vector<1x2x128xf32>
    tpu.vector_store %arg5[%c8_71, %c0_72, %c0_73], %108 {strides = array<i32>} : memref<9x8x128xf32, #tpu.memory_space<vmem>>, vector<1x2x128xf32>,
    %c0_i32_74 = arith.constant 0 : i32
    %109 = arith.cmpi eq, %arg1, %c0_i32_74 : i32
    %110 = arith.extui %109 : i1 to i32
    %c0_i32_75 = arith.constant 0 : i32
    %111 = arith.cmpi ne, %110, %c0_i32_75 : i32
    scf.if %111 {
      %112 = tpu.iota {dimensions = array<i32: 1>} : vector<1x128xi32>
      %cst_76 = arith.constant 0.000000e+00 : f32
      %113 = vector.broadcast %cst_76 : f32 to vector<1x128xf32>
      %c0_77 = arith.constant 0 : index
      %c0_78 = arith.constant 0 : index
      %c0_79 = arith.constant 0 : index
      %114 = vector.load %arg5[%c0_77, %c0_78, %c0_79] : memref<9x8x128xf32, #tpu.memory_space<vmem>>, vector<1x8x128xf32>
      %115 = vector.shape_cast %114 : vector<1x8x128xf32> to vector<8x128xf32>
      %cst_80 = arith.constant dense<0.000000e+00> : vector<128xf32>
      %116 = vector.multi_reduction <add>, %115, %cst_80 [0] : vector<8x128xf32> to vector<128xf32>
      %117 = vector.shape_cast %116 : vector<128xf32> to vector<1x128xf32>
      %cst_81 = arith.constant dense<0.000000e+00> : vector<1xf32>
      %118 = vector.multi_reduction <add>, %117, %cst_81 [1] : vector<1x128xf32> to vector<1xf32>
      %119 = vector.shape_cast %118 : vector<1xf32> to vector<1x1xf32>
      %c1_82 = arith.constant 1 : index
      %c0_83 = arith.constant 0 : index
      %c0_84 = arith.constant 0 : index
      %120 = vector.load %arg5[%c1_82, %c0_83, %c0_84] : memref<9x8x128xf32, #tpu.memory_space<vmem>>, vector<1x8x128xf32>
      %121 = vector.shape_cast %120 : vector<1x8x128xf32> to vector<8x128xf32>
      %cst_85 = arith.constant dense<0.000000e+00> : vector<128xf32>
      %122 = vector.multi_reduction <add>, %121, %cst_85 [0] : vector<8x128xf32> to vector<128xf32>
      %123 = vector.shape_cast %122 : vector<128xf32> to vector<1x128xf32>
      %cst_86 = arith.constant dense<0.000000e+00> : vector<1xf32>
      %124 = vector.multi_reduction <add>, %123, %cst_86 [1] : vector<1x128xf32> to vector<1xf32>
      %125 = vector.shape_cast %124 : vector<1xf32> to vector<1x1xf32>
      %c2_87 = arith.constant 2 : index
      %c0_88 = arith.constant 0 : index
      %c0_89 = arith.constant 0 : index
      %126 = vector.load %arg5[%c2_87, %c0_88, %c0_89] : memref<9x8x128xf32, #tpu.memory_space<vmem>>, vector<1x8x128xf32>
      %127 = vector.shape_cast %126 : vector<1x8x128xf32> to vector<8x128xf32>
      %cst_90 = arith.constant dense<0.000000e+00> : vector<128xf32>
      %128 = vector.multi_reduction <add>, %127, %cst_90 [0] : vector<8x128xf32> to vector<128xf32>
      %129 = vector.shape_cast %128 : vector<128xf32> to vector<1x128xf32>
      %cst_91 = arith.constant dense<0.000000e+00> : vector<1xf32>
      %130 = vector.multi_reduction <add>, %129, %cst_91 [1] : vector<1x128xf32> to vector<1xf32>
      %131 = vector.shape_cast %130 : vector<1xf32> to vector<1x1xf32>
      %cst_92 = arith.constant 2.000000e+00 : f32
      %132 = vector.broadcast %cst_92 : f32 to vector<1x1xf32>
      %133 = arith.mulf %132, %119 : vector<1x1xf32>
      %cst_93 = arith.constant 9.99999997E-7 : f32
      %134 = vector.broadcast %cst_93 : f32 to vector<1x1xf32>
      %135 = arith.addf %133, %134 : vector<1x1xf32>
      %136 = arith.addf %125, %131 : vector<1x1xf32>
      %cst_94 = arith.constant 9.99999997E-7 : f32
      %137 = vector.broadcast %cst_94 : f32 to vector<1x1xf32>
      %138 = arith.addf %136, %137 : vector<1x1xf32>
      %cst_95 = arith.constant 1.000000e-10 : f32
      %139 = vector.broadcast %cst_95 : f32 to vector<1x1xf32>
      %140 = arith.addf %138, %139 : vector<1x1xf32>
      %141 = arith.divf %135, %140 : vector<1x1xf32>
      %c0_i32_96 = arith.constant 0 : i32
      %142 = vector.broadcast %c0_i32_96 : i32 to vector<1x128xi32>
      %143 = arith.cmpi eq, %112, %142 : vector<1x128xi32>
      %144 = vector.shape_cast %141 : vector<1x1xf32> to vector<1x1xf32>
      %145 = vector.broadcast %144 : vector<1x1xf32> to vector<1x128xf32>
      %146 = arith.select %143, %145, %113 : vector<1x128xi1>, vector<1x128xf32>
      %c3_97 = arith.constant 3 : index
      %c0_98 = arith.constant 0 : index
      %c0_99 = arith.constant 0 : index
      %147 = vector.load %arg5[%c3_97, %c0_98, %c0_99] : memref<9x8x128xf32, #tpu.memory_space<vmem>>, vector<1x8x128xf32>
      %148 = vector.shape_cast %147 : vector<1x8x128xf32> to vector<8x128xf32>
      %cst_100 = arith.constant dense<0.000000e+00> : vector<128xf32>
      %149 = vector.multi_reduction <add>, %148, %cst_100 [0] : vector<8x128xf32> to vector<128xf32>
      %150 = vector.shape_cast %149 : vector<128xf32> to vector<1x128xf32>
      %cst_101 = arith.constant dense<0.000000e+00> : vector<1xf32>
      %151 = vector.multi_reduction <add>, %150, %cst_101 [1] : vector<1x128xf32> to vector<1xf32>
      %152 = vector.shape_cast %151 : vector<1xf32> to vector<1x1xf32>
      %c4_102 = arith.constant 4 : index
      %c0_103 = arith.constant 0 : index
      %c0_104 = arith.constant 0 : index
      %153 = vector.load %arg5[%c4_102, %c0_103, %c0_104] : memref<9x8x128xf32, #tpu.memory_space<vmem>>, vector<1x8x128xf32>
      %154 = vector.shape_cast %153 : vector<1x8x128xf32> to vector<8x128xf32>
      %cst_105 = arith.constant dense<0.000000e+00> : vector<128xf32>
      %155 = vector.multi_reduction <add>, %154, %cst_105 [0] : vector<8x128xf32> to vector<128xf32>
      %156 = vector.shape_cast %155 : vector<128xf32> to vector<1x128xf32>
      %cst_106 = arith.constant dense<0.000000e+00> : vector<1xf32>
      %157 = vector.multi_reduction <add>, %156, %cst_106 [1] : vector<1x128xf32> to vector<1xf32>
      %158 = vector.shape_cast %157 : vector<1xf32> to vector<1x1xf32>
      %c5_107 = arith.constant 5 : index
      %c0_108 = arith.constant 0 : index
      %c0_109 = arith.constant 0 : index
      %159 = vector.load %arg5[%c5_107, %c0_108, %c0_109] : memref<9x8x128xf32, #tpu.memory_space<vmem>>, vector<1x8x128xf32>
      %160 = vector.shape_cast %159 : vector<1x8x128xf32> to vector<8x128xf32>
      %cst_110 = arith.constant dense<0.000000e+00> : vector<128xf32>
      %161 = vector.multi_reduction <add>, %160, %cst_110 [0] : vector<8x128xf32> to vector<128xf32>
      %162 = vector.shape_cast %161 : vector<128xf32> to vector<1x128xf32>
      %cst_111 = arith.constant dense<0.000000e+00> : vector<1xf32>
      %163 = vector.multi_reduction <add>, %162, %cst_111 [1] : vector<1x128xf32> to vector<1xf32>
      %164 = vector.shape_cast %163 : vector<1xf32> to vector<1x1xf32>
      %cst_112 = arith.constant 2.000000e+00 : f32
      %165 = vector.broadcast %cst_112 : f32 to vector<1x1xf32>
      %166 = arith.mulf %165, %152 : vector<1x1xf32>
      %cst_113 = arith.constant 9.99999997E-7 : f32
      %167 = vector.broadcast %cst_113 : f32 to vector<1x1xf32>
      %168 = arith.addf %166, %167 : vector<1x1xf32>
      %169 = arith.addf %158, %164 : vector<1x1xf32>
      %cst_114 = arith.constant 9.99999997E-7 : f32
      %170 = vector.broadcast %cst_114 : f32 to vector<1x1xf32>
      %171 = arith.addf %169, %170 : vector<1x1xf32>
      %cst_115 = arith.constant 1.000000e-10 : f32
      %172 = vector.broadcast %cst_115 : f32 to vector<1x1xf32>
      %173 = arith.addf %171, %172 : vector<1x1xf32>
      %174 = arith.divf %168, %173 : vector<1x1xf32>
      %c1_i32_116 = arith.constant 1 : i32
      %175 = vector.broadcast %c1_i32_116 : i32 to vector<1x128xi32>
      %176 = arith.cmpi eq, %112, %175 : vector<1x128xi32>
      %177 = vector.shape_cast %174 : vector<1x1xf32> to vector<1x1xf32>
      %178 = vector.broadcast %177 : vector<1x1xf32> to vector<1x128xf32>
      %179 = arith.select %176, %178, %146 : vector<1x128xi1>, vector<1x128xf32>
      %c6_117 = arith.constant 6 : index
      %c0_118 = arith.constant 0 : index
      %c0_119 = arith.constant 0 : index
      %180 = vector.load %arg5[%c6_117, %c0_118, %c0_119] : memref<9x8x128xf32, #tpu.memory_space<vmem>>, vector<1x8x128xf32>
      %181 = vector.shape_cast %180 : vector<1x8x128xf32> to vector<8x128xf32>
      %cst_120 = arith.constant dense<0.000000e+00> : vector<128xf32>
      %182 = vector.multi_reduction <add>, %181, %cst_120 [0] : vector<8x128xf32> to vector<128xf32>
      %183 = vector.shape_cast %182 : vector<128xf32> to vector<1x128xf32>
      %cst_121 = arith.constant dense<0.000000e+00> : vector<1xf32>
      %184 = vector.multi_reduction <add>, %183, %cst_121 [1] : vector<1x128xf32> to vector<1xf32>
      %185 = vector.shape_cast %184 : vector<1xf32> to vector<1x1xf32>
      %c7_122 = arith.constant 7 : index
      %c0_123 = arith.constant 0 : index
      %c0_124 = arith.constant 0 : index
      %186 = vector.load %arg5[%c7_122, %c0_123, %c0_124] : memref<9x8x128xf32, #tpu.memory_space<vmem>>, vector<1x8x128xf32>
      %187 = vector.shape_cast %186 : vector<1x8x128xf32> to vector<8x128xf32>
      %cst_125 = arith.constant dense<0.000000e+00> : vector<128xf32>
      %188 = vector.multi_reduction <add>, %187, %cst_125 [0] : vector<8x128xf32> to vector<128xf32>
      %189 = vector.shape_cast %188 : vector<128xf32> to vector<1x128xf32>
      %cst_126 = arith.constant dense<0.000000e+00> : vector<1xf32>
      %190 = vector.multi_reduction <add>, %189, %cst_126 [1] : vector<1x128xf32> to vector<1xf32>
      %191 = vector.shape_cast %190 : vector<1xf32> to vector<1x1xf32>
      %c8_127 = arith.constant 8 : index
      %c0_128 = arith.constant 0 : index
      %c0_129 = arith.constant 0 : index
      %192 = vector.load %arg5[%c8_127, %c0_128, %c0_129] : memref<9x8x128xf32, #tpu.memory_space<vmem>>, vector<1x8x128xf32>
      %193 = vector.shape_cast %192 : vector<1x8x128xf32> to vector<8x128xf32>
      %cst_130 = arith.constant dense<0.000000e+00> : vector<128xf32>
      %194 = vector.multi_reduction <add>, %193, %cst_130 [0] : vector<8x128xf32> to vector<128xf32>
      %195 = vector.shape_cast %194 : vector<128xf32> to vector<1x128xf32>
      %cst_131 = arith.constant dense<0.000000e+00> : vector<1xf32>
      %196 = vector.multi_reduction <add>, %195, %cst_131 [1] : vector<1x128xf32> to vector<1xf32>
      %197 = vector.shape_cast %196 : vector<1xf32> to vector<1x1xf32>
      %cst_132 = arith.constant 2.000000e+00 : f32
      %198 = vector.broadcast %cst_132 : f32 to vector<1x1xf32>
      %199 = arith.mulf %198, %185 : vector<1x1xf32>
      %cst_133 = arith.constant 9.99999997E-7 : f32
      %200 = vector.broadcast %cst_133 : f32 to vector<1x1xf32>
      %201 = arith.addf %199, %200 : vector<1x1xf32>
      %202 = arith.addf %191, %197 : vector<1x1xf32>
      %cst_134 = arith.constant 9.99999997E-7 : f32
      %203 = vector.broadcast %cst_134 : f32 to vector<1x1xf32>
      %204 = arith.addf %202, %203 : vector<1x1xf32>
      %cst_135 = arith.constant 1.000000e-10 : f32
      %205 = vector.broadcast %cst_135 : f32 to vector<1x1xf32>
      %206 = arith.addf %204, %205 : vector<1x1xf32>
      %207 = arith.divf %201, %206 : vector<1x1xf32>
      %c2_i32_136 = arith.constant 2 : i32
      %208 = vector.broadcast %c2_i32_136 : i32 to vector<1x128xi32>
      %209 = arith.cmpi eq, %112, %208 : vector<1x128xi32>
      %210 = vector.shape_cast %207 : vector<1x1xf32> to vector<1x1xf32>
      %211 = vector.broadcast %210 : vector<1x1xf32> to vector<1x128xf32>
      %212 = arith.select %209, %211, %179 : vector<1x128xi1>, vector<1x128xf32>
      %c0_137 = arith.constant 0 : index
      %c0_138 = arith.constant 0 : index
      %c0_139 = arith.constant 0 : index
      %213 = vector.load %arg4[%c0_137, %c0_138, %c0_139] : memref<1x1x128xf32, #tpu.memory_space<vmem>>, vector<1x1x128xf32>
      %214 = vector.shape_cast %213 : vector<1x1x128xf32> to vector<1x128xf32>
      %215 = vector.shape_cast %212 : vector<1x128xf32> to vector<1x1x128xf32>
      tpu.vector_store %arg4[%c0_137, %c0_138, %c0_139], %215 {strides = array<i32>} : memref<1x1x128xf32, #tpu.memory_space<vmem>>, vector<1x1x128xf32>,
    } else {
    }
    return
  }
  func.func @transform_0(%arg0: i32, %arg1: i32) -> (i32, i32, i32, i32) {
    %c0_i32 = arith.constant 0 : i32
    %c0_i32_0 = arith.constant 0 : i32
    %c0_i32_1 = arith.constant 0 : i32
    return %arg0, %c0_i32, %arg1, %c0_i32_0 : i32, i32, i32, i32
  }
  func.func @transform_1(%arg0: i32, %arg1: i32) -> (i32, i32, i32, i32) {
    %c0_i32 = arith.constant 0 : i32
    %c0_i32_0 = arith.constant 0 : i32
    %c0_i32_1 = arith.constant 0 : i32
    return %arg0, %c0_i32, %arg1, %c0_i32_0 : i32, i32, i32, i32
  }
  func.func @transform_2(%arg0: i32, %arg1: i32) -> (i32, i32, i32) {
    %c0_i32 = arith.constant 0 : i32
    %c0_i32_0 = arith.constant 0 : i32
    %c0_i32_1 = arith.constant 0 : i32
    return %arg0, %c0_i32, %c0_i32_0 : i32, i32, i32
  }
}

</mosaic_0001>

<llo_original>
// kernel: tpu_custom_call.1
$region0: #{tpu_custom_call.1}
  #allocation0 [shape = 'u32[]', space=smem, size = 0x4, offset = 0x4, fixed_abs, tag = 'smem constant byte address 0x4 - core index']
  #allocation1 [shape = 'u32[72,128]{1,0:T(1,128)}', space=vmem, size = 0x9000, scoped, tag = 'internal scratch']
  #allocation2 [shape = 'f32[9,8,128]{2,1,0:T(8,128)}', space=vmem, size = 0x9000, scoped, tag = 'scratch operand']
  %s0 = inlined_call_operand.hbm [shape: f32[2,4,2,128], index: 0, kind: input, shape index: {}]
  %s1 = inlined_call_operand.hbm [shape: s32[2,1,2,128], index: 1, kind: input, shape index: {}]
  %s2 = inlined_call_operand.hbm [shape: f32[2,1,128], index: 2, kind: output, shape index: {}]
  %s3 = sld [smem:[#allocation0]]
  $region57: #{tpu_custom_call.1} parent=0
    _
  %s5 = ssub.s32 1, %s3
  %s6 = scalar_select 0, %s5, %s3
  $region1: #{tpu_custom_call.1} parent=0
    #allocation3 [shape = 'u8[8192]{0}', space=vmem, size = 0x2000, scoped, tag = 'input window, operand 0']
    #allocation4 [shape = 's32[2]{0}', space=sflag, size = 0x8, scoped, tag = 'scoped memory for tpu_custom_call.1']
    #allocation5 [shape = 's32[2]{0}', space=sflag, size = 0x8, scoped, tag = 'scoped memory for tpu_custom_call.1']
    #allocation6 [shape = 'u8[2048]{0}', space=vmem, size = 0x800, scoped, tag = 'input window, operand 1']
    #allocation7 [shape = 's32[2]{0}', space=sflag, size = 0x8, scoped, tag = 'scoped memory for tpu_custom_call.1']
    #allocation8 [shape = 'u8[1024]{0}', space=vmem, size = 0x400, scoped, tag = 'output window, operand 0']
    %7 = vsyncpa [#allocation4], 0
    %s8 = scalar_lea.sflag [#allocation4], 1
    %9 = vsyncpa %s8, 0
    %10 = vsyncpa [#allocation7], 0
    %s11 = scalar_lea.sflag [#allocation7], 1
    %12 = vsyncpa %s11, 0
    %13 = vsyncpa [#allocation5], 0
    %s14 = scalar_lea.sflag [#allocation5], 1
    %15 = vsyncpa %s14, 0
    loop: start=0, step=1, limit=4
    $region2: #{tpu_custom_call.1} parent=1 // loop_pre_header
      _
    $region3: #{tpu_custom_call.1} parent=1 // loop_header
      %s17 = sphi 0, %s21
      %p18 = scmp.ge.s32.totalorder %s17, 4
      %s24 = sphi 0, %s36
      %s25 = sphi 0, %s32
      %s26 = sphi 0, %s24
      %s27 = sphi 0, %s25
      %s28 = sphi 0, %s26
      %s29 = sphi 0, %s27
      %s41 = sphi 0, %s43
      %s44 = sphi 0, %s41
      %s45 = sphi 0, %s44
      %s61 = sphi 0, %s45
      %s69 = sphi 0, %s71
      %s72 = sphi 0, %s69
      %s73 = sphi 0, %s72
      %s89 = sphi 0, %s73
      %s95 = sphi 0, %s97
      %s98 = sphi 0, %s95
      %s99 = sphi 0, %s98
      %s115 = sphi 0, %s99
    $region4: #{tpu_custom_call.1} parent=1 // loop_header_branch
      %20 = sbr.rel (%p18) target = $region8
    $region5: #{tpu_custom_call.1} parent=1 // loop_body
      %s22 = ssub.s32 %s17, 1
      %s23 = ssub.s32 %s17, 2
      %s30 = sadd.s32 1, %s25
      %p31 = scmp.ge.s32.totalorder %s30, 1
      %s32 = scalar_select %p31, 0, %s30
      %s33 = sadd.s32 1, %s24
      %s34 = scalar_select %p31, %s33, %s24
      %p35 = scmp.ge.s32.totalorder %s34, 2
      %s36 = scalar_select %p35, 0, %s34
      %s37 = ssub.s32 %s24, %s36
      %s38 = ssub.s32 %s25, %s32
      %s39 = sor.u32 %s37, %s38
      %p40 = scmp.eq.s32.totalorder %s39, 0
      %s42 = sadd.s32 %s41, 1
      %s43 = scalar_select %p40, %s41, %s42
      %p46 = pneg %p40
      %p47 = scmp.eq.s32.totalorder %s17, 1
      %p48 = por %p46, %p47
      %p49 = scmp.ne.s32.totalorder %s41, %s44
      %p50 = scmp.eq.s32.totalorder %s17, 0
      %p51 = por %p49, %p50
      %p52 = scmp.ne.s32.totalorder %s41, %s44
      %p53 = scmp.eq.s32.totalorder %s22, 1
      %p54 = por %p52, %p53
      %p55 = scmp.ne.s32.totalorder %s44, %s45
      %p56 = scmp.eq.s32.totalorder %s22, 0
      %p57 = por %p55, %p56
      %p58 = scmp.ne.s32.totalorder %s44, %s45
      %p59 = scmp.eq.s32.totalorder %s23, 1
      %p60 = por %p58, %p59
      %p62 = scmp.ne.s32.totalorder %s45, %s61
      %p63 = scmp.eq.s32.totalorder %s23, 0
      %p64 = por %p62, %p63
      %s65 = ssub.s32 %s24, %s36
      %s66 = ssub.s32 %s25, %s32
      %s67 = sor.u32 %s65, %s66
      %p68 = scmp.eq.s32.totalorder %s67, 0
      %s70 = sadd.s32 %s69, 1
      %s71 = scalar_select %p68, %s69, %s70
      %p74 = pneg %p68
      %p75 = scmp.eq.s32.totalorder %s17, 1
      %p76 = por %p74, %p75
      %p77 = scmp.ne.s32.totalorder %s69, %s72
      %p78 = scmp.eq.s32.totalorder %s17, 0
      %p79 = por %p77, %p78
      %p80 = scmp.ne.s32.totalorder %s69, %s72
      %p81 = scmp.eq.s32.totalorder %s22, 1
      %p82 = por %p80, %p81
      %p83 = scmp.ne.s32.totalorder %s72, %s73
      %p84 = scmp.eq.s32.totalorder %s22, 0
      %p85 = por %p83, %p84
      %p86 = scmp.ne.s32.totalorder %s72, %s73
      %p87 = scmp.eq.s32.totalorder %s23, 1
      %p88 = por %p86, %p87
      %p90 = scmp.ne.s32.totalorder %s73, %s89
      %p91 = scmp.eq.s32.totalorder %s23, 0
      %p92 = por %p90, %p91
      %s93 = ssub.s32 %s24, %s36
      %p94 = scmp.eq.s32.totalorder %s93, 0
      %s96 = sadd.s32 %s95, 1
      %s97 = scalar_select %p94, %s95, %s96
      %p100 = pneg %p94
      %p101 = scmp.eq.s32.totalorder %s17, 1
      %p102 = por %p100, %p101
      %p103 = scmp.ne.s32.totalorder %s95, %s98
      %p104 = scmp.eq.s32.totalorder %s17, 0
      %p105 = por %p103, %p104
      %p106 = scmp.ne.s32.totalorder %s95, %s98
      %p107 = scmp.eq.s32.totalorder %s22, 1
      %p108 = por %p106, %p107
      %p109 = scmp.ne.s32.totalorder %s98, %s99
      %p110 = scmp.eq.s32.totalorder %s22, 0
      %p111 = por %p109, %p110
      %p112 = scmp.ne.s32.totalorder %s98, %s99
      %p113 = scmp.eq.s32.totalorder %s23, 1
      %p114 = por %p112, %p113
      %p116 = scmp.ne.s32.totalorder %s99, %s115
      %p117 = scmp.eq.s32.totalorder %s23, 0
      %p118 = por %p116, %p117
      %p119 = scmp.le.s32.totalorder 1, %s17
      %p120 = scmp.lt.s32.totalorder %s17, 3
      %p121 = pnand %p119, %p120
      %p122 = pneg %p121
      // Predicated region
      $region9: #{tpu_custom_call.1} parent=5 // pred_check
        _
      $region10: #{tpu_custom_call.1} parent=5 // pred_check_branch
        %124 = sbr.rel (%p121) target = $region12
      $region11: #{tpu_custom_call.1} parent=5 // pred_region
        %s125 = ssub.s32 %s17, 1
      $region12: #{tpu_custom_call.1} parent=5 // pred_fallthru
        _
      %p126 = scmp.lt.s32.totalorder %s17, 2
      // Predicated region
      $region13: #{tpu_custom_call.1} parent=5 // pred_check
        %p127 = pneg %p126
      $region14: #{tpu_custom_call.1} parent=5 // pred_check_branch
        %129 = sbr.rel (%p127) target = $region16
      $region15: #{tpu_custom_call.1} parent=5 // pred_region
        // Predicated region
        $region17: #{tpu_custom_call.1} parent=15 // pred_check
          %p130 = pneg %p51
        $region18: #{tpu_custom_call.1} parent=15 // pred_check_branch
          %132 = sbr.rel (%p130) target = $region20
        $region19: #{tpu_custom_call.1} parent=15 // pred_region
          %s133 = sand.u32 %s41, 1
          %s134 = scalar_lea.sflag [#allocation4], %s133
          %s135 = sand.u32 %s41, 1
          %s136 = smul.addr %s135, 8
          %s137 = scalar_lea.vmem [#allocation3], %s136
          %139 = vsyncadd %s134, 0
          %s140 = smul.addr %s24, 4
          %s141 = sadd.s32 %s25, %s140
          %s142 = smul.addr %s141, 2
          %s143 = scalar_lea.hbm %s0, %s142
          %s144 = sshll.u32 %s143, 4
          %s145 = int_to_ptr.hbm [resolvable:$true] %s144
          %s146 = sshll.u32 %s137, 4
          %s147 = int_to_ptr.vmem [resolvable:$true] %s146
          %152 = dma.hbm_to_vmem [thread:$0]  %s145, 128, %s147, %s134, 32, 32, 2
        $region20: #{tpu_custom_call.1} parent=15 // pred_fallthru
          _
        // Predicated region
        $region21: #{tpu_custom_call.1} parent=15 // pred_check
          %p153 = pneg %p79
        $region22: #{tpu_custom_call.1} parent=15 // pred_check_branch
          %155 = sbr.rel (%p153) target = $region24
        $region23: #{tpu_custom_call.1} parent=15 // pred_region
          %s156 = sand.u32 %s69, 1
          %s157 = scalar_lea.sflag [#allocation7], %s156
          %s158 = sand.u32 %s69, 1
          %s159 = smul.addr %s158, 2
          %s160 = scalar_lea.vmem [#allocation6], %s159
          %162 = vsyncadd %s157, 0
          %s163 = sadd.s32 %s25, %s24
          %s164 = smul.addr %s163, 2
          %s165 = scalar_lea.hbm %s1, %s164
          %s167 = sshll.u32 %s165, 4
          %s168 = int_to_ptr.hbm [resolvable:$true] %s167
          %s169 = sshll.u32 %s160, 4
          %s170 = int_to_ptr.vmem [resolvable:$true] %s169
          %172 = dma.hbm_to_vmem [thread:$0]  %s168, 32, %s170, %s157
        $region24: #{tpu_custom_call.1} parent=15 // pred_fallthru
          _
      $region16: #{tpu_custom_call.1} parent=5 // pred_fallthru
        _
      %p173 = scmp.le.s32.totalorder 1, %s17
      %p174 = scmp.lt.s32.totalorder %s17, 3
      %p175 = pnand %p173, %p174
      %p176 = pneg %p175
      // Predicated region
      $region25: #{tpu_custom_call.1} parent=5 // pred_check
        _
      $region26: #{tpu_custom_call.1} parent=5 // pred_check_branch
        %178 = sbr.rel (%p175) target = $region28
      $region27: #{tpu_custom_call.1} parent=5 // pred_region
        %s179 = ssub.s32 %s17, 1
        %s180 = sand.u32 %s44, 1
        %s181 = scalar_lea.sflag [#allocation4], %s180
        %s182 = sand.u32 %s44, 1
        %s183 = smul.addr %s182, 8
        %s184 = scalar_lea.vmem [#allocation3], %s183
        // Predicated region
        $region29: #{tpu_custom_call.1} parent=27 // pred_check
          %p185 = pneg %p57
        $region30: #{tpu_custom_call.1} parent=27 // pred_check_branch
          %187 = sbr.rel (%p185) target = $region32
        $region31: #{tpu_custom_call.1} parent=27 // pred_region
          %189 = dma.done %s181, 128
        $region32: #{tpu_custom_call.1} parent=27 // pred_fallthru
          _
        %s190 = sand.u32 %s72, 1
        %s191 = scalar_lea.sflag [#allocation7], %s190
        %s192 = sand.u32 %s72, 1
        %s193 = smul.addr %s192, 2
        %s194 = scalar_lea.vmem [#allocation6], %s193
        // Predicated region
        $region33: #{tpu_custom_call.1} parent=27 // pred_check
          %p195 = pneg %p85
        $region34: #{tpu_custom_call.1} parent=27 // pred_check_branch
          %197 = sbr.rel (%p195) target = $region36
        $region35: #{tpu_custom_call.1} parent=27 // pred_region
          %199 = dma.done %s191, 32
        $region36: #{tpu_custom_call.1} parent=27 // pred_fallthru
          _
        %s200 = sand.u32 %s44, 1
        %s201 = scalar_lea.sflag [#allocation4], %s200
        %s202 = sand.u32 %s44, 1
        %s203 = smul.addr %s202, 8
        %s204 = scalar_lea.vmem [#allocation3], %s203
        %p205 = pneg %p57
        %p206 = pneg %p54
        %s207 = sand.u32 %s72, 1
        %s208 = scalar_lea.sflag [#allocation7], %s207
        %s209 = sand.u32 %s72, 1
        %s210 = smul.addr %s209, 2
        %s211 = scalar_lea.vmem [#allocation6], %s210
        %p212 = pneg %p85
        %p213 = pneg %p82
        %p214 = pneg %p111
        %p215 = pneg %p108
        %s216 = sand.u32 %s98, 1
        %s217 = scalar_lea.sflag [#allocation5], %s216
        %s218 = sand.u32 %s98, 1
        %s219 = scalar_lea.vmem [#allocation8], %s218
        %p220 = scmp.eq.s32.totalorder %s27, 0
        // Predicated region
        $region37: #{tpu_custom_call.1} parent=27 // pred_check
          %p221 = pneg %p220
        $region38: #{tpu_custom_call.1} parent=27 // pred_check_branch
          %223 = sbr.rel (%p221) target = $region40
        $region39: #{tpu_custom_call.1} parent=27 // pred_region
          %224 = vst [vmem:[#allocation2] sm:$0xff] 0.0
          %225 = vst [vmem:[#allocation2 + $0x8] sm:$0xff] 0.0
          %226 = vst [vmem:[#allocation2 + $0x10] sm:$0xff] 0.0
          %227 = vst [vmem:[#allocation2 + $0x18] sm:$0xff] 0.0
          %228 = vst [vmem:[#allocation2 + $0x20] sm:$0xff] 0.0
          %229 = vst [vmem:[#allocation2 + $0x28] sm:$0xff] 0.0
          %230 = vst [vmem:[#allocation2 + $0x30] sm:$0xff] 0.0
          %231 = vst [vmem:[#allocation2 + $0x38] sm:$0xff] 0.0
          %232 = vst [vmem:[#allocation2 + $0x40] sm:$0xff] 0.0
        $region40: #{tpu_custom_call.1} parent=27 // pred_fallthru
          _
        %v233 = vld [vmem:[%s184] sm:$0x3]
        %s234 = scalar_lea.vmem %s184, 2 [#allocation3]
        %v235 = vld [vmem:[%s234] sm:$0x3]
        %s236 = scalar_lea.vmem %s184, 4 [#allocation3]
        %v237 = vld [vmem:[%s236] sm:$0x3]
        %s238 = scalar_lea.vmem %s184, 6 [#allocation3]
        %v239 = vld [vmem:[%s238] sm:$0x3]
        %v240 = vld [vmem:[%s194] sm:$0x3]
        %v241 = vmax.f32 %v233, %v235
        %v242 = vmax.f32 %v241, %v237
        %v243 = vmax.f32 %v242, %v239
        %v244 = vsub.f32 %v233, %v243
        %v245 = vmul.f32 %v244, 1.442695
        %v246 = vpow.pop %v245
        %v247 = vsub.f32 %v235, %v243
        %v248 = vmul.f32 %v247, 1.442695
        %v249 = vpow.pop %v248
        %v250 = vsub.f32 %v237, %v243
        %v251 = vmul.f32 %v250, 1.442695
        %v252 = vpow.pop %v251
        %v253 = vsub.f32 %v239, %v243
        %v254 = vmul.f32 %v253, 1.442695
        %v255 = vpow.pop %v254
        %v256 = vadd.f32 %v246, %v249
        %v257 = vadd.f32 %v256, %v252
        %v258 = vadd.f32 %v257, %v255
        %v259 = vrcp.pop %v258
        %v260 = vmul.f32 %v249, %v259
        %vm261 = vcmp.eq.s32.totalorder %v240, 1
        %v262 = vsel %vm261, %v260, 0.0
        %v263 = vmul.f32 %v260, %v260
        %v264 = vsel %vm261, 1.0, 0.0
        %v265 = vmul.f32 %v252, %v259
        %vm266 = vcmp.eq.s32.totalorder %v240, 2
        %v267 = vsel %vm266, %v265, 0.0
        %v268 = vmul.f32 %v265, %v265
        %v269 = vsel %vm266, 1.0, 0.0
        %v270 = vmul.f32 %v255, %v259
        %vm271 = vcmp.eq.s32.totalorder %v240, 3
        %v272 = vsel %vm271, %v270, 0.0
        %v273 = vmul.f32 %v270, %v270
        %v274 = vsel %vm271, 1.0, 0.0
        %v275 = vld [vmem:[#allocation2] sm:$0x3]
        %v276 = vadd.f32 %v275, %v262
        %277 = vst [vmem:[#allocation2] sm:$0x3] %v276
        %s278 = scalar_lea.vmem [#allocation2], 8
        %v279 = vld [vmem:[%s278] sm:$0x3]
        %v280 = vadd.f32 %v279, %v263
        %281 = vst [vmem:[%s278] sm:$0x3] %v280
        %s282 = scalar_lea.vmem [#allocation2], 16
        %v283 = vld [vmem:[%s282] sm:$0x3]
        %v284 = vadd.f32 %v283, %v264
        %285 = vst [vmem:[%s282] sm:$0x3] %v284
        %s286 = scalar_lea.vmem [#allocation2], 24
        %v287 = vld [vmem:[%s286] sm:$0x3]
        %v288 = vadd.f32 %v287, %v267
        %289 = vst [vmem:[%s286] sm:$0x3] %v288
        %s290 = scalar_lea.vmem [#allocation2], 32
        %v291 = vld [vmem:[%s290] sm:$0x3]
        %v292 = vadd.f32 %v291, %v268
        %293 = vst [vmem:[%s290] sm:$0x3] %v292
        %s294 = scalar_lea.vmem [#allocation2], 40
        %v295 = vld [vmem:[%s294] sm:$0x3]
        %v296 = vadd.f32 %v295, %v269
        %297 = vst [vmem:[%s294] sm:$0x3] %v296
        %s298 = scalar_lea.vmem [#allocation2], 48
        %v299 = vld [vmem:[%s298] sm:$0x3]
        %v300 = vadd.f32 %v299, %v272
        %301 = vst [vmem:[%s298] sm:$0x3] %v300
        %s302 = scalar_lea.vmem [#allocation2], 56
        %v303 = vld [vmem:[%s302] sm:$0x3]
        %v304 = vadd.f32 %v303, %v273
        %305 = vst [vmem:[%s302] sm:$0x3] %v304
        %s306 = scalar_lea.vmem [#allocation2], 64
        %v307 = vld [vmem:[%s306] sm:$0x3]
        %v308 = vadd.f32 %v307, %v274
        %309 = vst [vmem:[%s306] sm:$0x3] %v308
        // Predicated region
        $region41: #{tpu_custom_call.1} parent=27 // pred_check
          %p310 = pneg %p220
        $region42: #{tpu_custom_call.1} parent=27 // pred_check_branch
          %312 = sbr.rel (%p310) target = $region44
        $region43: #{tpu_custom_call.1} parent=27 // pred_region
          %v313 = vlaneseq
          %v314 = vand.u32 %v313, 127
          %v315 = vld [vmem:[#allocation2] sm:$0xff]
          %v316 = vrot.slane %v315, 4
          %v317 = vadd.f32 %v315, %v316
          %v318 = vrot.slane %v317, 2
          %v319 = vadd.f32 %v317, %v318
          %v320 = vrot.slane %v319, 1
          %v321 = vadd.f32 %v319, %v320
          %322 = vadd.xlane.f32.xlu0 %v321
          %v323 = vpop.xlane.xlu0 %322
          %v324 = vld [vmem:[%s278] sm:$0xff]
          %v325 = vrot.slane %v324, 4
          %v326 = vadd.f32 %v324, %v325
          %v327 = vrot.slane %v326, 2
          %v328 = vadd.f32 %v326, %v327
          %v329 = vrot.slane %v328, 1
          %v330 = vadd.f32 %v328, %v329
          %331 = vadd.xlane.f32.xlu0 %v330
          %v332 = vpop.xlane.xlu0 %331
          %v333 = vld [vmem:[%s282] sm:$0xff]
          %v334 = vrot.slane %v333, 4
          %v335 = vadd.f32 %v333, %v334
          %v336 = vrot.slane %v335, 2
          %v337 = vadd.f32 %v335, %v336
          %v338 = vrot.slane %v337, 1
          %v339 = vadd.f32 %v337, %v338
          %340 = vadd.xlane.f32.xlu0 %v339
          %v341 = vpop.xlane.xlu0 %340
          %v342 = vmul.f32 %v323, 2.0
          %v343 = vadd.f32 %v342, 1e-06
          %v344 = vadd.f32 %v332, %v341
          %v345 = vadd.f32 %v344, 1e-06
          %v346 = vadd.f32 %v345, 1e-10
          %v347 = vrcp.pop %v346
          %v348 = vmul.f32 %v346, %v347
          %v349 = vsub.f32 1.0, %v348
          %v350 = vmul.f32 %v347, %v349
          %v351 = vadd.f32 %v347, %v350
          %vm352 = vweird.f32 %v346
          %vm353 = vweird.f32 %v347
          %vm354 = vmor %vm352, %vm353
          %v355 = vsel %vm354, %v347, %v351
          %v356 = vand.u32 2147483647, %v346
          %vm357 = vcmp.eq.f32.partialorder %v356, 8.507059e+37
          %v358 = vand.u32 %v346, 2147483648
          %v359 = vor.u32 1.1754944e-38, %v358
          %v360 = vsel %vm357, %v359, %v355
          %v361 = vmul.f32 %v343, %v360
          %vm362 = vcmp.eq.s32.totalorder %v314, 0
          %v363 = vsel %vm362, %v361, 0.0
          %v364 = vld [vmem:[%s286] sm:$0xff]
          %v365 = vrot.slane %v364, 4
          %v366 = vadd.f32 %v364, %v365
          %v367 = vrot.slane %v366, 2
          %v368 = vadd.f32 %v366, %v367
          %v369 = vrot.slane %v368, 1
          %v370 = vadd.f32 %v368, %v369
          %371 = vadd.xlane.f32.xlu0 %v370
          %v372 = vpop.xlane.xlu0 %371
          %v373 = vld [vmem:[%s290] sm:$0xff]
          %v374 = vrot.slane %v373, 4
          %v375 = vadd.f32 %v373, %v374
          %v376 = vrot.slane %v375, 2
          %v377 = vadd.f32 %v375, %v376
          %v378 = vrot.slane %v377, 1
          %v379 = vadd.f32 %v377, %v378
          %380 = vadd.xlane.f32.xlu0 %v379
          %v381 = vpop.xlane.xlu0 %380
          %v382 = vld [vmem:[%s294] sm:$0xff]
          %v383 = vrot.slane %v382, 4
          %v384 = vadd.f32 %v382, %v383
          %v385 = vrot.slane %v384, 2
          %v386 = vadd.f32 %v384, %v385
          %v387 = vrot.slane %v386, 1
          %v388 = vadd.f32 %v386, %v387
          %389 = vadd.xlane.f32.xlu0 %v388
          %v390 = vpop.xlane.xlu0 %389
          %v391 = vmul.f32 %v372, 2.0
          %v392 = vadd.f32 %v391, 1e-06
          %v393 = vadd.f32 %v381, %v390
          %v394 = vadd.f32 %v393, 1e-06
          %v395 = vadd.f32 %v394, 1e-10
          %v396 = vrcp.pop %v395
          %v397 = vmul.f32 %v395, %v396
          %v398 = vsub.f32 1.0, %v397
          %v399 = vmul.f32 %v396, %v398
          %v400 = vadd.f32 %v396, %v399
          %vm401 = vweird.f32 %v395
          %vm402 = vweird.f32 %v396
          %vm403 = vmor %vm401, %vm402
          %v404 = vsel %vm403, %v396, %v400
          %v405 = vand.u32 2147483647, %v395
          %vm406 = vcmp.eq.f32.partialorder %v405, 8.507059e+37
          %v407 = vand.u32 %v395, 2147483648
          %v408 = vor.u32 1.1754944e-38, %v407
          %v409 = vsel %vm406, %v408, %v404
          %v410 = vmul.f32 %v392, %v409
          %vm411 = vcmp.eq.s32.totalorder %v314, 1
          %v412 = vsel %vm411, %v410, %v363
          %v413 = vld [vmem:[%s298] sm:$0xff]
          %v414 = vrot.slane %v413, 4
          %v415 = vadd.f32 %v413, %v414
          %v416 = vrot.slane %v415, 2
          %v417 = vadd.f32 %v415, %v416
          %v418 = vrot.slane %v417, 1
          %v419 = vadd.f32 %v417, %v418
          %420 = vadd.xlane.f32.xlu0 %v419
          %v421 = vpop.xlane.xlu0 %420
          %v422 = vld [vmem:[%s302] sm:$0xff]
          %v423 = vrot.slane %v422, 4
          %v424 = vadd.f32 %v422, %v423
          %v425 = vrot.slane %v424, 2
          %v426 = vadd.f32 %v424, %v425
          %v427 = vrot.slane %v426, 1
          %v428 = vadd.f32 %v426, %v427
          %429 = vadd.xlane.f32.xlu0 %v428
          %v430 = vpop.xlane.xlu0 %429
          %v431 = vld [vmem:[%s306] sm:$0xff]
          %v432 = vrot.slane %v431, 4
          %v433 = vadd.f32 %v431, %v432
          %v434 = vrot.slane %v433, 2
          %v435 = vadd.f32 %v433, %v434
          %v436 = vrot.slane %v435, 1
          %v437 = vadd.f32 %v435, %v436
          %438 = vadd.xlane.f32.xlu0 %v437
          %v439 = vpop.xlane.xlu0 %438
          %v440 = vmul.f32 %v421, 2.0
          %v441 = vadd.f32 %v440, 1e-06
          %v442 = vadd.f32 %v430, %v439
          %v443 = vadd.f32 %v442, 1e-06
          %v444 = vadd.f32 %v443, 1e-10
          %v445 = vrcp.pop %v444
          %v446 = vmul.f32 %v444, %v445
          %v447 = vsub.f32 1.0, %v446
          %v448 = vmul.f32 %v445, %v447
          %v449 = vadd.f32 %v445, %v448
          %vm450 = vweird.f32 %v444
          %vm451 = vweird.f32 %v445
          %vm452 = vmor %vm450, %vm451
          %v453 = vsel %vm452, %v445, %v449
          %v454 = vand.u32 2147483647, %v444
          %vm455 = vcmp.eq.f32.partialorder %v454, 8.507059e+37
          %v456 = vand.u32 %v444, 2147483648
          %v457 = vor.u32 1.1754944e-38, %v456
          %v458 = vsel %vm455, %v457, %v453
          %v459 = vmul.f32 %v441, %v458
          %vm460 = vcmp.eq.s32.totalorder %v314, 2
          %v461 = vsel %vm460, %v459, %v412
          %462 = vst [vmem:[%s219] sm:$0x1] %v461
        $region44: #{tpu_custom_call.1} parent=27 // pred_fallthru
          _
        %s463 = sand.u32 %s98, 1
        %s464 = scalar_lea.sflag [#allocation5], %s463
        %s465 = sand.u32 %s98, 1
        %s466 = scalar_lea.vmem [#allocation8], %s465
        // Predicated region
        $region45: #{tpu_custom_call.1} parent=27 // pred_check
          %p467 = pneg %p108
        $region46: #{tpu_custom_call.1} parent=27 // pred_check_branch
          %469 = sbr.rel (%p467) target = $region48
        $region47: #{tpu_custom_call.1} parent=27 // pred_region
          %471 = vsyncadd %s464, 0
          %s472 = scalar_lea.hbm %s2, %s26
          %s474 = sshll.u32 %s466, 4
          %s475 = int_to_ptr.vmem [resolvable:$true] %s474
          %s476 = sshll.u32 %s472, 4
          %s477 = int_to_ptr.hbm [resolvable:$true] %s476
          %479 = dma.vmem_to_hbm [thread:$0]  %s475, 16, %s477, %s464
        $region48: #{tpu_custom_call.1} parent=27 // pred_fallthru
          _
      $region28: #{tpu_custom_call.1} parent=5 // pred_fallthru
        _
      %p480 = scmp.le.s32.totalorder 2, %s17
      // Predicated region
      $region49: #{tpu_custom_call.1} parent=5 // pred_check
        %p481 = pneg %p480
      $region50: #{tpu_custom_call.1} parent=5 // pred_check_branch
        %483 = sbr.rel (%p481) target = $region52
      $region51: #{tpu_custom_call.1} parent=5 // pred_region
        %s484 = ssub.s32 %s17, 2
        // Predicated region
        $region53: #{tpu_custom_call.1} parent=51 // pred_check
          %p485 = pneg %p114
        $region54: #{tpu_custom_call.1} parent=51 // pred_check_branch
          %487 = sbr.rel (%p485) target = $region56
        $region55: #{tpu_custom_call.1} parent=51 // pred_region
          %s488 = sand.u32 %s99, 1
          %s489 = scalar_lea.sflag [#allocation5], %s488
          %s490 = sand.u32 %s99, 1
          %s491 = scalar_lea.vmem [#allocation8], %s490
          %493 = dma.done %s489, 16
        $region56: #{tpu_custom_call.1} parent=51 // pred_fallthru
          _
      $region52: #{tpu_custom_call.1} parent=5 // pred_fallthru
        _
    $region6: #{tpu_custom_call.1} parent=1 // loop_footer
      %s21 = sadd.s32 1, %s17
    $region7: #{tpu_custom_call.1} parent=1 // loop_footer_branch
      %16 = sbr.rel target = $region3
    $region8: #{tpu_custom_call.1} parent=1 // loop_exit
      _
    %494 = vsyncpa [#allocation4], 1
    %s495 = scalar_lea.sflag [#allocation4], 1
    %496 = vsyncpa %s495, 1
    %497 = vsyncpa [#allocation7], 1
    %s498 = scalar_lea.sflag [#allocation7], 1
    %499 = vsyncpa %s498, 1
    %500 = vsyncpa [#allocation5], 1
    %s501 = scalar_lea.sflag [#allocation5], 1
    %502 = vsyncpa %s501, 1

</llo_original>
